<compile_context>
chip_gen: v5e
topology: v5e:2x2
jax: 0.10.0
libtpu: 0.0.40
codegen_flags: <defaults>
</compile_context>

<pallas_src>
import math

import jax
import jax.numpy as jnp
from jax.experimental import pallas as pl
from jax.experimental.pallas import tpu as pltpu


def _vmem_limit_bytes():
    cap = 128 * 1024 * 1024
    try:
        info = pltpu.get_tpu_info()
        cap = int(getattr(info, "vmem_capacity_bytes", None)
                  or getattr(info, "vmem_size_bytes", cap))
    except Exception:
        pass
    # ~96 MiB on 128-MiB parts (v5e/v6e), ~48 MiB on 64-MiB parts (v7x).
    return int(min((cap * 3) // 4, 100 * 1024 * 1024))


_VMEM_LIMIT = _vmem_limit_bytes()


# ----------------------------- in-kernel math ------------------------------

def _gelu(x):
    # TODO(synk): tanh-approximate GELU (guaranteed TPU lowering); PyTorch
    # nn.GELU default is erf — small systematic difference.
    c = math.sqrt(2.0 / math.pi)
    return 0.5 * x * (1.0 + jnp.tanh(c * (x + 0.044715 * x * x * x)))


def _softplus(x):
    xc = jnp.minimum(x, 30.0)
    return jnp.where(x > 30.0, x, jnp.log(1.0 + jnp.exp(xc)))


def _pick_tile(n, candidates):
    for c in candidates:
        if c <= n and n % c == 0:
            return c
    return n


def _round_up(n, m):
    return ((n + m - 1) // m) * m


# -------- fused linear: LN? -> (K-tiled) matmul -> bias/act -> +residual ------

def _make_linear_kernel(act, has_ln, has_res, multi_k, cache_ln):
    def kernel(*refs):
        it = iter(refs)
        x_ref = next(it)
        if has_ln:
            g_ref = next(it)
            bln_ref = next(it)
        w_ref = next(it)
        b_ref = next(it)
        r_ref = next(it) if has_res else None
        o_ref = next(it)
        acc_ref = next(it) if multi_k else None
        xb_ref = next(it) if cache_ln else None

        def ln_bf16():
            x = x_ref[0].astype(jnp.float32)
            mu = jnp.mean(x, axis=-1, keepdims=True)
            var = jnp.mean(jnp.square(x - mu), axis=-1, keepdims=True)
            x = (x - mu) * jax.lax.rsqrt(var + 1e-5)
            x = x * g_ref[...].astype(jnp.float32) + bln_ref[...].astype(jnp.float32)
            return x.astype(jnp.bfloat16)

        if has_ln:
            if cache_ln:
                # LN'd + bf16-cast activation cached once per (b, m-tile) and
                # reused across all N tiles (x block index is ni-invariant).
                @pl.when((pl.program_id(2) == 0) & (pl.program_id(3) == 0))
                def _():
                    xb_ref[...] = ln_bf16()
                xb = xb_ref[...]
            else:
                xb = ln_bf16()
        else:
            xb = x_ref[0].astype(jnp.bfloat16)

        part = jnp.dot(xb, w_ref[...], preferred_element_type=jnp.float32)

        def epilogue(y):
            y = y + b_ref[...].astype(jnp.float32)
            if act == "gelu":
                y = _gelu(y)
            elif act == "softplus":
                y = _softplus(y)
            if has_res:
                y = y + r_ref[0].astype(jnp.float32)
            o_ref[0] = y.astype(o_ref.dtype)

        if multi_k:
            @pl.when(pl.program_id(3) == 0)
            def _():
                acc_ref[...] = jnp.zeros_like(acc_ref)
            acc_ref[...] += part

            @pl.when(pl.program_id(3) == pl.num_programs(3) - 1)
            def _():
                epilogue(acc_ref[...])
        else:
            epilogue(part)
    return kernel


def fused_linear(x, w, b, *, act="none", ln=None, residual=None,
                 out_dtype=jnp.bfloat16):
    """y = act(LN?(x) @ w + b) (+ residual).
    x: (B, M, K) bf16/f32, w: (K, N) bf16 (N pre-padded to 128 if wide), b: (1, N) f32."""
    B, M, K = x.shape
    N = w.shape[1]
    assert N < 1024 or N % 128 == 0, "wide output dims must be pre-padded to 128"

    tn = N if N < 1024 else _pick_tile(N, (1024, 768, 512, 256, 128))
    tm = M if M <= 512 else _pick_tile(M, (512, 256, 128, 64, 32, 16, 8))
    tk = K if (ln is not None or K <= 512) else _pick_tile(K, (1024, 768, 512, 256))

    nn, nk = N // tn, K // tk
    has_ln = ln is not None
    has_res = residual is not None
    multi_k = nk > 1
    cache_ln = has_ln and nn > 1
    assert not (has_ln and multi_k)

    grid = (B, M // tm, nn, nk)

    in_specs = [pl.BlockSpec((1, tm, tk), lambda bi, mi, ni, ki: (bi, mi, ki))]
    args = [x]
    if has_ln:
        gamma, beta = ln
        in_specs += [pl.BlockSpec((1, K), lambda bi, mi, ni, ki: (0, 0)),
                     pl.BlockSpec((1, K), lambda bi, mi, ni, ki: (0, 0))]
        args += [gamma.reshape(1, K), beta.reshape(1, K)]
    in_specs += [pl.BlockSpec((tk, tn), lambda bi, mi, ni, ki: (ki, ni)),
                 pl.BlockSpec((1, tn), lambda bi, mi, ni, ki: (0, ni))]
    args += [w, b.reshape(1, N)]
    if has_res:
        in_specs += [pl.BlockSpec((1, tm, tn), lambda bi, mi, ni, ki: (bi, mi, ni))]
        args += [residual]

    scratch = []
    if multi_k:
        scratch.append(pltpu.VMEM((tm, tn), jnp.float32))
    if cache_ln:
        scratch.append(pltpu.VMEM((tm, K), jnp.bfloat16))

    ni_sem = "arbitrary" if cache_ln else "parallel"
    return pl.pallas_call(
        _make_linear_kernel(act, has_ln, has_res, multi_k, cache_ln),
        out_shape=jax.ShapeDtypeStruct((B, M, N), out_dtype),
        grid=grid,
        in_specs=in_specs,
        out_specs=pl.BlockSpec((1, tm, tn), lambda bi, mi, ni, ki: (bi, mi, ni)),
        scratch_shapes=scratch,
        compiler_params=pltpu.CompilerParams(
            dimension_semantics=("parallel", "parallel", ni_sem, "arbitrary"),
            vmem_limit_bytes=_VMEM_LIMIT),
    )(*args)


# ------------------- fused Conv1d -> GELU -> MaxPool1d(2) --------------------

def _make_conv_kernel(k_size, pad, l_conv):
    def kernel(x_ref, w_ref, b_ref, o_ref, *scratch):
        cin = x_ref.shape[-1]
        cout = o_ref.shape[-1]
        if pad > 0:
            # In-kernel 'same' padding: zero the halo rows in a VMEM scratch
            # (no wrapper jnp.pad HBM round-trip for the activation).
            xp_ref = scratch[0]
            zeros = jnp.zeros((pad, cin), xp_ref.dtype)
            xp_ref[pl.ds(0, pad), :] = zeros
            xp_ref[pl.ds(pad + l_conv, pad), :] = zeros
            xp_ref[pl.ds(pad, l_conv), :] = x_ref[0]

        acc = jnp.zeros((l_conv, cout), jnp.float32)
        for t in range(k_size):
            xt = xp_ref[pl.ds(t, l_conv), :] if pad > 0 else x_ref[0]
            acc = acc + jnp.dot(xt.astype(jnp.bfloat16), w_ref[t],
                                preferred_element_type=jnp.float32)
        y = _gelu(acc + b_ref[...].astype(jnp.float32))
        # MaxPool1d(2) in registers: pairwise max over adjacent conv rows.
        y = jnp.max(y.reshape(l_conv // 2, 2, cout), axis=1)
        o_ref[0] = y.astype(o_ref.dtype)
    return kernel


def conv_gelu_pool(x, w, b):
    """Conv1d 'same' -> GELU -> MaxPool1d(2), channels-last.
    x: (B, L, Cin) bf16, w: (k, Cin, Cout) bf16, b: (1, Cout) f32 -> (B, L//2, Cout) bf16."""
    B, L, Cin = x.shape
    k, _, Cout = w.shape
    pad = (k - 1) // 2
    assert L % 2 == 0
    scratch = [pltpu.VMEM((L + 2 * pad, Cin), x.dtype)] if pad > 0 else []
    # TODO(synk): at production sequence lengths the sequence axis should be
    # halo-tiled (manual DMA) instead of holding the whole sequence per grid step.
    return pl.pallas_call(
        _make_conv_kernel(k, pad, L),
        out_shape=jax.ShapeDtypeStruct((B, L // 2, Cout), jnp.bfloat16),
        grid=(B,),
        in_specs=[
            pl.BlockSpec((1, L, Cin), lambda bi: (bi, 0, 0)),
            pl.BlockSpec((k, Cin, Cout), lambda bi: (0, 0, 0)),
            pl.BlockSpec((1, Cout), lambda bi: (0, 0)),
        ],
        out_specs=pl.BlockSpec((1, L // 2, Cout), lambda bi: (bi, 0, 0)),
        scratch_shapes=scratch,
        compiler_params=pltpu.CompilerParams(
            dimension_semantics=("parallel",),
            vmem_limit_bytes=_VMEM_LIMIT),
    )(x, w, b)


def _stem_fold(x, k):
    """Fold k conv taps into the channel dim: (B, L, Cin) -> (B, L, k*Cin).
    Wrapper-side pre-interleave is only done for the tiny 4-channel raw input."""
    B, L, Cin = x.shape
    pad = (k - 1) // 2
    xp = jnp.pad(x, ((0, 0), (pad, pad), (0, 0)))
    return jnp.concatenate([xp[:, t:t + L, :] for t in range(k)], axis=-1)


# --------------------- flash-style multi-head attention ----------------------

def _make_flash_kernel(heads, dh, scale):
    C = heads * dh

    def kernel(q_ref, kv_ref, o_ref, m_sc, l_sc, acc_sc):
        kv_step = pl.program_id(2)

        @pl.when(kv_step == 0)
        def _():
            m_sc[...] = jnp.full_like(m_sc, -jnp.inf)
            l_sc[...] = jnp.zeros_like(l_sc)
            acc_sc[...] = jnp.zeros_like(acc_sc)

        # q/k/v split from the fused (rows, 3C) projection block in-kernel
        # (no HBM reshape/transpose pass); 1/sqrt(dh) folded into q.
        xq = q_ref[0, :, 0:C] * scale          # (tq, C) bf16
        xkv = kv_ref[0]                        # (tk, 3C) bf16

        for hd in range(heads):
            lo = hd * dh
            qh = xq[:, lo:lo + dh]
            kh = xkv[:, C + lo:C + lo + dh]
            vh = xkv[:, 2 * C + lo:2 * C + lo + dh]
            s = jnp.dot(qh, kh.T, preferred_element_type=jnp.float32)   # (tq, tk)
            m_prev = m_sc[hd]
            m_new = jnp.maximum(m_prev, jnp.max(s, axis=-1, keepdims=True))
            alpha = jnp.exp(m_prev - m_new)
            p = jnp.exp(s - m_new)
            l_sc[hd] = alpha * l_sc[hd] + jnp.sum(p, axis=-1, keepdims=True)
            acc_sc[hd] = alpha * acc_sc[hd] + jnp.dot(
                p.astype(jnp.bfloat16), vh, preferred_element_type=jnp.float32)
            m_sc[hd] = m_new

        @pl.when(kv_step == pl.num_programs(2) - 1)
        def _():
            # merge heads into one lane-dense (tq, C) store
            outs = [acc_sc[hd] / l_sc[hd] for hd in range(heads)]
            o_ref[0] = jnp.concatenate(outs, axis=-1).astype(o_ref.dtype)
    return kernel


def flash_attention(qkv, heads):
    """qkv: (B, N, 3C) bf16 -> (B, N, C) bf16; online softmax, (N,N) never built."""
    B, N, C3 = qkv.shape
    C = C3 // 3
    dh = C // heads
    scale = dh ** -0.5
    tq = N if N <= 256 else _pick_tile(N, (256, 128))
    tk = N if N <= 256 else _pick_tile(N, (512, 256, 128))
    return pl.pallas_call(
        _make_flash_kernel(heads, dh, scale),
        out_shape=jax.ShapeDtypeStruct((B, N, C), jnp.bfloat16),
        grid=(B, N // tq, N // tk),
        in_specs=[
            pl.BlockSpec((1, tq, C3), lambda bi, qi, ki: (bi, qi, 0)),
            pl.BlockSpec((1, tk, C3), lambda bi, qi, ki: (bi, ki, 0)),
        ],
        out_specs=pl.BlockSpec((1, tq, C), lambda bi, qi, ki: (bi, qi, 0)),
        scratch_shapes=[
            pltpu.VMEM((heads, tq, 1), jnp.float32),
            pltpu.VMEM((heads, tq, 1), jnp.float32),
            pltpu.VMEM((heads, tq, dh), jnp.float32),
        ],
        compiler_params=pltpu.CompilerParams(
            dimension_semantics=("parallel", "parallel", "arbitrary"),
            vmem_limit_bytes=_VMEM_LIMIT),
    )(qkv, qkv)


# ------------------------------ parameters -----------------------------------

def init_params(key, param, heads=8):
    C = param["channels"]
    num_conv = param["num_conv"]
    num_attn = param["num_attn"]
    ff = 4 * C
    scale = 0.05

    keys = iter(jax.random.split(key, 256))

    def w(shape):
        return (scale * jax.random.normal(next(keys), shape, jnp.float32)
                ).astype(jnp.bfloat16)

    def zeros2d(n):
        return jnp.zeros((1, n), jnp.float32)

    p = {"channels": C, "heads": heads}

    # Stem: Conv1d(4, C, 15); 15 taps folded into a single K = 60 contraction.
    p["stem_w"] = w((15, 4, C)).reshape(1, 15 * 4, C)
    p["stem_b"] = zeros2d(C)

    # Conv tower: Conv1d(C, C, 5)
    p["tower"] = [(w((5, C, C)), zeros2d(C)) for _ in range(num_conv)]

    # Transformer blocks (fused QKV weight wq|wk|wv -> (C, 3C))
    blocks = []
    for _ in range(num_attn):
        blocks.append({
            "ln1_g": jnp.ones((1, C), jnp.float32), "ln1_b": jnp.zeros((1, C), jnp.float32),
            "w_qkv": jnp.concatenate([w((C, C)), w((C, C)), w((C, C))], axis=1),
            "b_qkv": zeros2d(3 * C),
            "wo": w((C, C)), "bo": zeros2d(C),
            "ln2_g": jnp.ones((1, C), jnp.float32), "ln2_b": jnp.zeros((1, C), jnp.float32),
            "w1": w((C, ff)), "b1": zeros2d(ff),
            "w2": w((ff, C)), "b2": zeros2d(C),
        })
    p["blocks"] = blocks

    # Decode heads: track dim pre-padded to a multiple of 128 at init (lane-dense
    # stores, no per-forward pad/copy of the big head weight), weights bf16.
    for org, tracks in (("human", 5313), ("mouse", 1643)):
        tp = _round_up(tracks, 128)
        p[f"tracks_{org}"] = tracks
        p[f"pw_w_{org}"] = w((C, 2 * C))
        p[f"pw_b_{org}"] = zeros2d(2 * C)
        hw = scale * jax.random.normal(next(keys), (2 * C, tracks), jnp.float32)
        p[f"head_w_{org}"] = jnp.pad(hw, ((0, 0), (0, tp - tracks))).astype(jnp.bfloat16)
        p[f"head_b_{org}"] = jnp.zeros((1, tp), jnp.float32)
    return p


# ------------------------------ forward pass ---------------------------------

def enformer_forward(params, x, organisms):
    """x: (B, 4, L) float32 (PyTorch NCL layout).  organisms: 'human' | 'mouse'."""
    C = params["channels"]
    H = params["heads"]

    h = jnp.transpose(x, (0, 2, 1)).astype(jnp.bfloat16)     # (B, L, 4) channels-last

    # --- Stem: Conv1d(4, C, 15, pad=7) -> GELU -> MaxPool(2), taps folded to K=60
    h = conv_gelu_pool(_stem_fold(h, 15), params["stem_w"], params["stem_b"])

    # --- ConvTower: num_conv x [Conv1d(C, C, 5, pad=2) -> GELU -> MaxPool(2)]
    for wc, bc in params["tower"]:
        h = conv_gelu_pool(h, wc, bc)

    # (Rearrange 'b d n -> b n d' is a no-op: already channels-last (B, N, C).)

    # --- Transformer tower
    for blk in params["blocks"]:
        qkv = fused_linear(h, blk["w_qkv"], blk["b_qkv"],
                           ln=(blk["ln1_g"], blk["ln1_b"]))            # (B, N, 3C)
        o = flash_attention(qkv, H)                                     # (B, N, C)
        h = fused_linear(o, blk["wo"], blk["bo"], residual=h)           # +res fused
        f = fused_linear(h, blk["w1"], blk["b1"], act="gelu",
                         ln=(blk["ln2_g"], blk["ln2_b"]))
        h = fused_linear(f, blk["w2"], blk["b2"], residual=h)

    # --- Decode: center crop -> Pointwise -> OutputHead.  Batch is folded into M
    #     so the big track-head weight streams from HBM once, not once per batch.
    B, N, _ = h.shape
    target = min(64, N)
    start = (N - target) // 2
    h = h[:, start:start + target].reshape(1, B * target, C)
    h = fused_linear(h, params[f"pw_w_{organisms}"], params[f"pw_b_{organisms}"],
                     act="gelu")                                        # (1, B*N', 2C)
    out = fused_linear(h, params[f"head_w_{organisms}"],
                       params[f"head_b_{organisms}"], act="softplus",
                       out_dtype=jnp.float32)                           # (1, B*N', Tp)
    tp = out.shape[-1]
    out = out.reshape(B, target, tp)[..., :params[f"tracks_{organisms}"]]
    return out


# --------------------------------- main ---------------------------------------

if __name__ == "__main__":
    param = {"channels": 32, "num_conv": 2, "num_attn": 1,
             "dropout_attn": 0.1, "dropout_output": 0.1}

    key = jax.random.PRNGKey(0)
    kp, kx = jax.random.split(key)
    params = init_params(kp, param)

    B, L = 2, 64
    x = jax.random.uniform(kx, (B, 4, L), jnp.float32)        # one-hot-ish DNA input

    out_human = enformer_forward(params, x, "human")
    out_mouse = enformer_forward(params, x, "mouse")
    jax.block_until_ready((out_human, out_mouse))

    # L=64 -> stem pool 32 -> two tower pools -> 8 positions
    assert out_human.shape == (2, 8, 5313), out_human.shape
    assert out_mouse.shape == (2, 8, 1643), out_mouse.shape
    assert bool(jnp.all(jnp.isfinite(out_human))) and bool(jnp.all(jnp.isfinite(out_mouse)))
    assert bool(jnp.all(out_human >= 0.0)) and bool(jnp.all(out_mouse >= 0.0))
    print("KERNEL_OK")
</pallas_src>

<mosaic_0001>
module attributes {stable_mosaic.version = 11 : i64} {
  func.func @kernel(%arg0: i32, %arg1: memref<1x64x60xbf16, #tpu.memory_space<vmem>>, %arg2: memref<1x60x32xbf16, #tpu.memory_space<vmem>>, %arg3: memref<1x32xf32, #tpu.memory_space<vmem>>, %arg4: memref<1x32x32xbf16, #tpu.memory_space<vmem>>) attributes {dimension_semantics = [#tpu.dimension_semantics<parallel>], iteration_bounds = array<i64: 2>, scalar_prefetch = 0 : i64, scratch_operands = 0 : i64, tpu.core_type = #tpu.core_type<tc>, window_params = [{transform_indices = @transform_0, window_bounds = array<i64: 1, 64, 60>}, {pipeline_mode = #tpu.pipeline_mode<synchronous>, transform_indices = @transform_1, window_bounds = array<i64: 1, 60, 32>}, {pipeline_mode = #tpu.pipeline_mode<synchronous>, transform_indices = @transform_2, window_bounds = array<i64: 1, 32>}, {transform_indices = @transform_3, window_bounds = array<i64: 1, 32, 32>}]} {
    %cst = arith.constant 0.000000e+00 : f32
    %0 = vector.broadcast %cst : f32 to vector<64x32xf32>
    %c0 = arith.constant 0 : index
    %c0_0 = arith.constant 0 : index
    %c0_1 = arith.constant 0 : index
    %1 = vector.load %arg1[%c0, %c0_0, %c0_1] : memref<1x64x60xbf16, #tpu.memory_space<vmem>>, vector<1x64x60xbf16>
    %2 = vector.shape_cast %1 : vector<1x64x60xbf16> to vector<64x60xbf16>
    %c0_2 = arith.constant 0 : index
    %c0_3 = arith.constant 0 : index
    %c0_4 = arith.constant 0 : index
    %3 = vector.load %arg2[%c0_2, %c0_3, %c0_4] : memref<1x60x32xbf16, #tpu.memory_space<vmem>>, vector<1x60x32xbf16>
    %4 = vector.shape_cast %3 : vector<1x60x32xbf16> to vector<60x32xbf16>
    %cst_5 = arith.constant dense<0.000000e+00> : vector<64x32xf32>
    %5 = tpu.matmul %2, %4, %cst_5 {dimension_numbers = #tpu.dot_dimension_numbers<[1], [0], [0], [1], [0, 0, 1, 1], [], []>} : vector<64x60xbf16>, vector<60x32xbf16>, vector<64x32xf32> -> vector<64x32xf32>
    %6 = arith.addf %0, %5 : vector<64x32xf32>
    %c0_6 = arith.constant 0 : index
    %c0_7 = arith.constant 0 : index
    %7 = vector.load %arg3[%c0_6, %c0_7] : memref<1x32xf32, #tpu.memory_space<vmem>>, vector<1x32xf32>
    %8 = vector.broadcast %7 : vector<1x32xf32> to vector<64x32xf32>
    %9 = arith.addf %6, %8 : vector<64x32xf32>
    %cst_8 = arith.constant 5.000000e-01 : f32
    %10 = vector.broadcast %cst_8 : f32 to vector<64x32xf32>
    %11 = arith.mulf %10, %9 : vector<64x32xf32>
    %cst_9 = arith.constant 4.471500e-02 : f32
    %12 = vector.broadcast %cst_9 : f32 to vector<64x32xf32>
    %13 = arith.mulf %12, %9 : vector<64x32xf32>
    %14 = arith.mulf %13, %9 : vector<64x32xf32>
    %15 = arith.mulf %14, %9 : vector<64x32xf32>
    %16 = arith.addf %9, %15 : vector<64x32xf32>
    %cst_10 = arith.constant 0.797884583 : f32
    %17 = vector.broadcast %cst_10 : f32 to vector<64x32xf32>
    %18 = arith.mulf %17, %16 : vector<64x32xf32>
    %19 = math.tanh %18 : vector<64x32xf32>
    %cst_11 = arith.constant 1.000000e+00 : f32
    %20 = vector.broadcast %cst_11 : f32 to vector<64x32xf32>
    %21 = arith.addf %20, %19 : vector<64x32xf32>
    %22 = arith.mulf %11, %21 : vector<64x32xf32>
    %23 = vector.shape_cast %22 : vector<64x32xf32> to vector<32x2x32xf32>
    %cst_12 = arith.constant dense<0xFF800000> : vector<32x32xf32>
    %24 = vector.multi_reduction <maximumf>, %23, %cst_12 [1] : vector<32x2x32xf32> to vector<32x32xf32>
    %25 = arith.truncf %24 : vector<32x32xf32> to vector<32x32xbf16>
    %c0_13 = arith.constant 0 : index
    %c0_14 = arith.constant 0 : index
    %c0_15 = arith.constant 0 : index
    %26 = vector.load %arg4[%c0_13, %c0_14, %c0_15] : memref<1x32x32xbf16, #tpu.memory_space<vmem>>, vector<1x32x32xbf16>
    %27 = vector.shape_cast %26 : vector<1x32x32xbf16> to vector<32x32xbf16>
    %28 = vector.shape_cast %25 : vector<32x32xbf16> to vector<1x32x32xbf16>
    tpu.vector_store %arg4[%c0_13, %c0_14, %c0_15], %28 {strides = array<i32>} : memref<1x32x32xbf16, #tpu.memory_space<vmem>>, vector<1x32x32xbf16>,
    return
  }
  func.func @transform_0(%arg0: i32) -> (i32, i32, i32) {
    %c0_i32 = arith.constant 0 : i32
    %c0_i32_0 = arith.constant 0 : i32
    %c0_i32_1 = arith.constant 0 : i32
    return %arg0, %c0_i32, %c0_i32_0 : i32, i32, i32
  }
  func.func @transform_1(%arg0: i32) -> (i32, i32, i32) {
    %c0_i32 = arith.constant 0 : i32
    %c0_i32_0 = arith.constant 0 : i32
    %c0_i32_1 = arith.constant 0 : i32
    %c0_i32_2 = arith.constant 0 : i32
    return %c0_i32, %c0_i32_0, %c0_i32_1 : i32, i32, i32
  }
  func.func @transform_2(%arg0: i32) -> (i32, i32) {
    %c0_i32 = arith.constant 0 : i32
    %c0_i32_0 = arith.constant 0 : i32
    %c0_i32_1 = arith.constant 0 : i32
    return %c0_i32, %c0_i32_0 : i32, i32
  }
  func.func @transform_3(%arg0: i32) -> (i32, i32, i32) {
    %c0_i32 = arith.constant 0 : i32
    %c0_i32_0 = arith.constant 0 : i32
    %c0_i32_1 = arith.constant 0 : i32
    return %arg0, %c0_i32, %c0_i32_0 : i32, i32, i32
  }
}

</mosaic_0001>

<llo_original>
// kernel: tpu_custom_call.1
$region0: #{tpu_custom_call.1}
  #allocation0 [shape = 'u32[]', space=smem, size = 0x4, offset = 0x4, fixed_abs, tag = 'smem constant byte address 0x4 - core index']
  #allocation1 [shape = 'u32[72,128]{1,0:T(1,128)}', space=vmem, size = 0x9000, scoped, tag = 'internal scratch']
  %s0 = inlined_call_operand.vmem [shape: bf16[2,64,60], index: 0, kind: input, shape index: {}]
  %s1 = inlined_call_operand.vmem [shape: bf16[1,60,32], index: 1, kind: input, shape index: {}]
  %s2 = inlined_call_operand.vmem [shape: f32[1,32], index: 2, kind: input, shape index: {}]
  %s3 = inlined_call_operand.hbm [shape: bf16[2,32,32], index: 3, kind: output, shape index: {}]
  %s4 = sld [smem:[#allocation0]]
  $region45: #{tpu_custom_call.1} parent=0
    _
  %s6 = ssub.s32 1, %s4
  %s7 = scalar_select 0, %s6, %s4
  $region1: #{tpu_custom_call.1} parent=0
    #allocation2 [shape = 'u8[16384]{0}', space=vmem, size = 0x4000, scoped, tag = 'output window, operand 0']
    #allocation3 [shape = 's32[2]{0}', space=sflag, size = 0x8, scoped, tag = 'scoped memory for tpu_custom_call.1']
    %8 = vsyncpa [#allocation3], 0
    %s9 = scalar_lea.sflag [#allocation3], 1
    %10 = vsyncpa %s9, 0
    loop: start=0, step=1, limit=4
    $region2: #{tpu_custom_call.1} parent=1 // loop_pre_header
      _
    $region3: #{tpu_custom_call.1} parent=1 // loop_header
      %s12 = sphi 0, %s16
      %p13 = scmp.ge.s32.totalorder %s12, 4
      %s22 = sphi 0, %s24
      %s25 = sphi 0, %s22
      %s26 = sphi 0, %s25
      %s42 = sphi 0, %s26
      %s46 = sphi 0, %s46
      %s48 = sphi 0, %s46
      %s49 = sphi 0, %s48
      %s63 = sphi 0, %s49
      %s67 = sphi 0, %s67
      %s69 = sphi 0, %s67
      %s70 = sphi 0, %s69
      %s84 = sphi 0, %s70
      %s90 = sphi 0, %s92
      %s93 = sphi 0, %s90
      %s94 = sphi 0, %s93
      %s110 = sphi 0, %s94
    $region4: #{tpu_custom_call.1} parent=1 // loop_header_branch
      %15 = sbr.rel (%p13) target = $region8
    $region5: #{tpu_custom_call.1} parent=1 // loop_body
      %s17 = ssub.s32 %s12, 1
      %s18 = ssub.s32 %s12, 2
      %s19 = sadd.s32 %s12, 1
      %s20 = ssub.s32 %s12, %s19
      %p21 = scmp.eq.s32.totalorder %s20, 0
      %s23 = sadd.s32 %s22, 1
      %s24 = scalar_select %p21, %s22, %s23
      %p27 = pneg %p21
      %p28 = scmp.eq.s32.totalorder %s12, 1
      %p29 = por %p27, %p28
      %p30 = scmp.ne.s32.totalorder %s22, %s25
      %p31 = scmp.eq.s32.totalorder %s12, 0
      %p32 = por %p30, %p31
      %p33 = scmp.ne.s32.totalorder %s22, %s25
      %p34 = scmp.eq.s32.totalorder %s17, 1
      %p35 = por %p33, %p34
      %p36 = scmp.ne.s32.totalorder %s25, %s26
      %p37 = scmp.eq.s32.totalorder %s17, 0
      %p38 = por %p36, %p37
      %p39 = scmp.ne.s32.totalorder %s25, %s26
      %p40 = scmp.eq.s32.totalorder %s18, 1
      %p41 = por %p39, %p40
      %p43 = scmp.ne.s32.totalorder %s26, %s42
      %p44 = scmp.eq.s32.totalorder %s18, 0
      %p45 = por %p43, %p44
      %s47 = sadd.s32 %s46, 1
      %p50 = scmp.eq.s32.totalorder %s12, 1
      %p51 = scmp.ne.s32.totalorder %s46, %s48
      %p52 = scmp.eq.s32.totalorder %s12, 0
      %p53 = por %p51, %p52
      %p54 = scmp.ne.s32.totalorder %s46, %s48
      %p55 = scmp.eq.s32.totalorder %s17, 1
      %p56 = por %p54, %p55
      %p57 = scmp.ne.s32.totalorder %s48, %s49
      %p58 = scmp.eq.s32.totalorder %s17, 0
      %p59 = por %p57, %p58
      %p60 = scmp.ne.s32.totalorder %s48, %s49
      %p61 = scmp.eq.s32.totalorder %s18, 1
      %p62 = por %p60, %p61
      %p64 = scmp.ne.s32.totalorder %s49, %s63
      %p65 = scmp.eq.s32.totalorder %s18, 0
      %p66 = por %p64, %p65
      %s68 = sadd.s32 %s67, 1
      %p71 = scmp.eq.s32.totalorder %s12, 1
      %p72 = scmp.ne.s32.totalorder %s67, %s69
      %p73 = scmp.eq.s32.totalorder %s12, 0
      %p74 = por %p72, %p73
      %p75 = scmp.ne.s32.totalorder %s67, %s69
      %p76 = scmp.eq.s32.totalorder %s17, 1
      %p77 = por %p75, %p76
      %p78 = scmp.ne.s32.totalorder %s69, %s70
      %p79 = scmp.eq.s32.totalorder %s17, 0
      %p80 = por %p78, %p79
      %p81 = scmp.ne.s32.totalorder %s69, %s70
      %p82 = scmp.eq.s32.totalorder %s18, 1
      %p83 = por %p81, %p82
      %p85 = scmp.ne.s32.totalorder %s70, %s84
      %p86 = scmp.eq.s32.totalorder %s18, 0
      %p87 = por %p85, %p86
      %s88 = ssub.s32 %s12, %s19
      %p89 = scmp.eq.s32.totalorder %s88, 0
      %s91 = sadd.s32 %s90, 1
      %s92 = scalar_select %p89, %s90, %s91
      %p95 = pneg %p89
      %p96 = scmp.eq.s32.totalorder %s12, 1
      %p97 = por %p95, %p96
      %p98 = scmp.ne.s32.totalorder %s90, %s93
      %p99 = scmp.eq.s32.totalorder %s12, 0
      %p100 = por %p98, %p99
      %p101 = scmp.ne.s32.totalorder %s90, %s93
      %p102 = scmp.eq.s32.totalorder %s17, 1
      %p103 = por %p101, %p102
      %p104 = scmp.ne.s32.totalorder %s93, %s94
      %p105 = scmp.eq.s32.totalorder %s17, 0
      %p106 = por %p104, %p105
      %p107 = scmp.ne.s32.totalorder %s93, %s94
      %p108 = scmp.eq.s32.totalorder %s18, 1
      %p109 = por %p107, %p108
      %p111 = scmp.ne.s32.totalorder %s94, %s110
      %p112 = scmp.eq.s32.totalorder %s18, 0
      %p113 = por %p111, %p112
      %p114 = scmp.le.s32.totalorder 1, %s12
      %p115 = scmp.lt.s32.totalorder %s12, 3
      %p116 = pnand %p114, %p115
      %p117 = pneg %p116
      // Predicated region
      $region9: #{tpu_custom_call.1} parent=5 // pred_check
        _
      $region10: #{tpu_custom_call.1} parent=5 // pred_check_branch
        %119 = sbr.rel (%p116) target = $region12
      $region11: #{tpu_custom_call.1} parent=5 // pred_region
        %s120 = ssub.s32 %s12, 1
        // Predicated region
        $region13: #{tpu_custom_call.1} parent=11 // pred_check
          %p121 = pneg %p59
        $region14: #{tpu_custom_call.1} parent=11 // pred_check_branch
          %123 = sbr.rel (%p121) target = $region16
        $region15: #{tpu_custom_call.1} parent=11 // pred_region
          _
        $region16: #{tpu_custom_call.1} parent=11 // pred_fallthru
          _
        // Predicated region
        $region17: #{tpu_custom_call.1} parent=11 // pred_check
          %p124 = pneg %p80
        $region18: #{tpu_custom_call.1} parent=11 // pred_check_branch
          %126 = sbr.rel (%p124) target = $region20
        $region19: #{tpu_custom_call.1} parent=11 // pred_region
          _
        $region20: #{tpu_custom_call.1} parent=11 // pred_fallthru
          _
      $region12: #{tpu_custom_call.1} parent=5 // pred_fallthru
        _
      %p127 = scmp.lt.s32.totalorder %s12, 2
      // Predicated region
      $region21: #{tpu_custom_call.1} parent=5 // pred_check
        %p128 = pneg %p127
      $region22: #{tpu_custom_call.1} parent=5 // pred_check_branch
        %130 = sbr.rel (%p128) target = $region24
      $region23: #{tpu_custom_call.1} parent=5 // pred_region
        // Predicated region
        $region25: #{tpu_custom_call.1} parent=23 // pred_check
          %p131 = pneg %p32
        $region26: #{tpu_custom_call.1} parent=23 // pred_check_branch
          %133 = sbr.rel (%p131) target = $region28
        $region27: #{tpu_custom_call.1} parent=23 // pred_region
          %p134 = scmp.lt.s32.totalorder %s12, 1
          %s135 = scalar_select %p134, %s12, 1
          %s136 = smul.addr %s135, 8
          %s137 = smul.addr %s136, 4
          %s138 = scalar_lea.vmem %s0, %s137
        $region28: #{tpu_custom_call.1} parent=23 // pred_fallthru
          _
      $region24: #{tpu_custom_call.1} parent=5 // pred_fallthru
        _
      %p139 = scmp.le.s32.totalorder 1, %s12
      %p140 = scmp.lt.s32.totalorder %s12, 3
      %p141 = pnand %p139, %p140
      %p142 = pneg %p141
      // Predicated region
      $region29: #{tpu_custom_call.1} parent=5 // pred_check
        _
      $region30: #{tpu_custom_call.1} parent=5 // pred_check_branch
        %144 = sbr.rel (%p141) target = $region32
      $region31: #{tpu_custom_call.1} parent=5 // pred_region
        %s145 = ssub.s32 %s12, 1
        %p146 = scmp.lt.s32.totalorder %s17, 1
        %s147 = scalar_select %p146, %s17, 1
        %s148 = smul.addr %s147, 8
        %s149 = smul.addr %s148, 4
        %s150 = scalar_lea.vmem %s0, %s149
        %p151 = pneg %p38
        %p152 = pneg %p35
        %p153 = pneg %p59
        %p154 = pneg %p56
        %p155 = pneg %p80
        %p156 = pneg %p77
        %p157 = pneg %p106
        %p158 = pneg %p103
        %s159 = sand.u32 %s93, 1
        %s160 = scalar_lea.sflag [#allocation3], %s159
        %s161 = sand.u32 %s93, 1
        %s162 = smul.addr %s161, 16
        %s163 = scalar_lea.vmem [#allocation2], %s162
        %p164 = scmp.lt.s32.totalorder %s17, 1
        %s165 = scalar_select %p164, %s17, 1
        %s166 = smul.addr %s165, 8
        %s167 = smul.addr %s166, 4
        %s168 = scalar_lea.vmem %s0, %s167
        %v170 = vld [vmem:[%s168] sm:$0xf]
        %v171 = vld [vmem:[%s168 + $0x4] sm:$0xf]
        %v172 = vld [vmem:[%s168 + $0x8] sm:$0xf]
        %v173 = vld [vmem:[%s168 + $0xc] sm:$0xf]
        %v174 = vld [vmem:[%s168 + $0x10] sm:$0xf]
        %v175 = vld [vmem:[%s168 + $0x14] sm:$0xf]
        %v176 = vld [vmem:[%s168 + $0x18] sm:$0xf]
        %v177 = vld [vmem:[%s168 + $0x1c] sm:$0xf]
        %v178 = vld [vmem:[%s1] sm:$0xf]
        %v179 = vld [vmem:[%s1 + $0x4] sm:$0xf]
        %v180 = vld [vmem:[%s1 + $0x8] sm:$0xf]
        %v181 = vld [vmem:[%s1 + $0xc] sm:$0xf]
        %v182 = vld [vmem:[%s1 + $0x10] sm:$0xf]
        %v183 = vld [vmem:[%s1 + $0x14] sm:$0xf]
        %v184 = vld [vmem:[%s1 + $0x18] sm:$0xf]
        %v185 = vld [vmem:[%s1 + $0x1c] sm:$0x3]
        %v186 = vld [vmem:[%s2] sm:$0x1]
        %v188 = vperm.slane %v186, 0
        %v198 = vunpack.c.l.b16 %v170
        %v199 = vunpack.c.l.b16 %v171
        %v200 = vunpack.c.l.b16 %v172
        %v201 = vunpack.c.l.b16 %v173
        %v202 = vunpack.c.l.b16 %v174
        %v203 = vunpack.c.l.b16 %v175
        %v204 = vunpack.c.l.b16 %v176
        %v205 = vunpack.c.l.b16 %v177
        %v206 = vpack.c.b16 %v199, %v198
        %v207 = vpack.c.b16 %v201, %v200
        %v208 = vpack.c.b16 %v203, %v202
        %v209 = vpack.c.b16 %v205, %v204
        %v218 = vunpack.c.l.b16 %v178
        %v219 = vunpack.c.l.b16 %v179
        %v220 = vunpack.c.l.b16 %v180
        %v221 = vunpack.c.l.b16 %v181
        %v222 = vunpack.c.l.b16 %v182
        %v223 = vunpack.c.l.b16 %v183
        %v224 = vunpack.c.l.b16 %v184
        %v225 = vunpack.c.l.b16 %v185
        %v226 = vpack.c.b16 %v219, %v218
        %v227 = vpack.c.b16 %v221, %v220
        %v228 = vpack.c.b16 %v223, %v222
        %v229 = vpack.c.b16 %v225, %v224
        %vm233 = vcmask 490496
        %v235 = vsel %vm233, %v206, 0
        %v238 = vsel %vm233, %v207, 0
        %v241 = vsel %vm233, %v208, 0
        %v244 = vsel %vm233, %v209, 0
        %vm246 = vcmask 1045504
        %v248 = vsel %vm246, %v229, 0
        %250 = vmatpush.bf16.msra.mxu0 0
        %251 = vmatpush.bf16.msra.mxu0 0
        %252 = vmatpush.bf16.msra.mxu0 0
        %253 = vmatpush.bf16.msra.mxu0 0
        %254 = vmatpush.bf16.msra.mxu0 %v248
        %255 = vmatpush.bf16.msra.mxu0 %v228
        %256 = vmatpush.bf16.msra.mxu0 %v227
        %257 = vmatpush.bf16.msra.mxu0 %v226
        %258 = vmatmul.bf16.gmra.mxu0 %v235
        %v259 = vpop.f32.mrf.mxu0
        %v260 = vadd.f32 %v188, %v259
        %v261 = vpop.f32.mrf.mxu0
        %v262 = vadd.f32 %v188, %v261
        %263 = vmatmul.bf16.gmra.mxu0 %v238
        %v264 = vpop.f32.mrf.mxu0
        %v265 = vadd.f32 %v188, %v264
        %v266 = vpop.f32.mrf.mxu0
        %v267 = vadd.f32 %v188, %v266
        %268 = vmatmul.bf16.gmra.mxu0 %v241
        %v269 = vpop.f32.mrf.mxu0
        %v270 = vadd.f32 %v188, %v269
        %v271 = vpop.f32.mrf.mxu0
        %v272 = vadd.f32 %v188, %v271
        %273 = vmatmul.bf16.gmra.mxu0 %v244
        %v274 = vpop.f32.mrf.mxu0
        %v275 = vadd.f32 %v188, %v274
        %v276 = vpop.f32.mrf.mxu0
        %v277 = vadd.f32 %v188, %v276
        %278 = vdwg.mxu0
        %v279 = vmul.f32 %v260, 0.5
        %v280 = vmul.f32 %v262, 0.5
        %v281 = vmul.f32 %v265, 0.5
        %v282 = vmul.f32 %v267, 0.5
        %v283 = vmul.f32 %v270, 0.5
        %v284 = vmul.f32 %v272, 0.5
        %v285 = vmul.f32 %v275, 0.5
        %v286 = vmul.f32 %v277, 0.5
        %v287 = vmul.f32 %v260, 0.044715
        %v288 = vmul.f32 %v262, 0.044715
        %v289 = vmul.f32 %v265, 0.044715
        %v290 = vmul.f32 %v267, 0.044715
        %v291 = vmul.f32 %v270, 0.044715
        %v292 = vmul.f32 %v272, 0.044715
        %v293 = vmul.f32 %v275, 0.044715
        %v294 = vmul.f32 %v277, 0.044715
        %v295 = vmul.f32 %v287, %v260
        %v296 = vmul.f32 %v288, %v262
        %v297 = vmul.f32 %v289, %v265
        %v298 = vmul.f32 %v290, %v267
        %v299 = vmul.f32 %v291, %v270
        %v300 = vmul.f32 %v292, %v272
        %v301 = vmul.f32 %v293, %v275
        %v302 = vmul.f32 %v294, %v277
        %v303 = vmul.f32 %v295, %v260
        %v304 = vmul.f32 %v296, %v262
        %v305 = vmul.f32 %v297, %v265
        %v306 = vmul.f32 %v298, %v267
        %v307 = vmul.f32 %v299, %v270
        %v308 = vmul.f32 %v300, %v272
        %v309 = vmul.f32 %v301, %v275
        %v310 = vmul.f32 %v302, %v277
        %v311 = vadd.f32 %v260, %v303
        %v312 = vadd.f32 %v262, %v304
        %v313 = vadd.f32 %v265, %v305
        %v314 = vadd.f32 %v267, %v306
        %v315 = vadd.f32 %v270, %v307
        %v316 = vadd.f32 %v272, %v308
        %v317 = vadd.f32 %v275, %v309
        %v318 = vadd.f32 %v277, %v310
        %v319 = vmul.f32 %v311, 0.7978846
        %v320 = vmul.f32 %v312, 0.7978846
        %v321 = vmul.f32 %v313, 0.7978846
        %v322 = vmul.f32 %v314, 0.7978846
        %v323 = vmul.f32 %v315, 0.7978846
        %v324 = vmul.f32 %v316, 0.7978846
        %v325 = vmul.f32 %v317, 0.7978846
        %v326 = vmul.f32 %v318, 0.7978846
        %v327 = vtanh.pop %v319
        %v328 = vtanh.pop %v320
        %v329 = vtanh.pop %v321
        %v330 = vtanh.pop %v322
        %v331 = vtanh.pop %v323
        %v332 = vtanh.pop %v324
        %v333 = vtanh.pop %v325
        %v334 = vtanh.pop %v326
        %v335 = vadd.f32 %v327, 1.0
        %v336 = vadd.f32 %v328, 1.0
        %v337 = vadd.f32 %v329, 1.0
        %v338 = vadd.f32 %v330, 1.0
        %v339 = vadd.f32 %v331, 1.0
        %v340 = vadd.f32 %v332, 1.0
        %v341 = vadd.f32 %v333, 1.0
        %v342 = vadd.f32 %v334, 1.0
        %v343 = vmul.f32 %v279, %v335
        %v344 = vmul.f32 %v280, %v336
        %v345 = vmul.f32 %v281, %v337
        %v346 = vmul.f32 %v282, %v338
        %v347 = vmul.f32 %v283, %v339
        %v348 = vmul.f32 %v284, %v340
        %v349 = vmul.f32 %v285, %v341
        %v350 = vmul.f32 %v286, %v342
        %v359 = vrot.slane %v343, 2
        %v360 = vrot.slane %v343, 4
        %v361 = vrot.slane %v343, 6
        %v362 = vrot.slane %v344, 2
        %v363 = vrot.slane %v344, 4
        %v364 = vrot.slane %v344, 6
        %v365 = vrot.slane %v345, 2
        %v366 = vrot.slane %v345, 4
        %v367 = vrot.slane %v345, 6
        %v368 = vrot.slane %v346, 2
        %v369 = vrot.slane %v346, 4
        %v370 = vrot.slane %v346, 6
        %v371 = vrot.slane %v347, 2
        %v372 = vrot.slane %v347, 4
        %v373 = vrot.slane %v347, 6
        %v374 = vrot.slane %v348, 2
        %v375 = vrot.slane %v348, 4
        %v376 = vrot.slane %v348, 6
        %v377 = vrot.slane %v349, 2
        %v378 = vrot.slane %v349, 4
        %v379 = vrot.slane %v349, 6
        %v380 = vrot.slane %v350, 2
        %v381 = vrot.slane %v350, 4
        %v382 = vrot.slane %v350, 6
        %vm407 = vcmask 254976
        %v408 = vsel %vm407, %v343, -inf
        %v409 = vrot.slane %v408, 4
        %v410 = vmax.f32 %v408, %v409
        %v411 = vrot.slane %v410, 2
        %v412 = vmax.f32 %v410, %v411
        %v413 = vrot.slane %v412, 1
        %v414 = vmax.f32 %v412, %v413
        %v415 = vsel %vm407, %v359, -inf
        %v416 = vrot.slane %v415, 4
        %v417 = vmax.f32 %v415, %v416
        %v418 = vrot.slane %v417, 2
        %v419 = vmax.f32 %v417, %v418
        %v420 = vrot.slane %v419, 1
        %v421 = vmax.f32 %v419, %v420
        %v422 = vsel %vm407, %v360, -inf
        %v423 = vrot.slane %v422, 4
        %v424 = vmax.f32 %v422, %v423
        %v425 = vrot.slane %v424, 2
        %v426 = vmax.f32 %v424, %v425
        %v427 = vrot.slane %v426, 1
        %v428 = vmax.f32 %v426, %v427
        %v429 = vsel %vm407, %v361, -inf
        %v430 = vrot.slane %v429, 4
        %v431 = vmax.f32 %v429, %v430
        %v432 = vrot.slane %v431, 2
        %v433 = vmax.f32 %v431, %v432
        %v434 = vrot.slane %v433, 1
        %v435 = vmax.f32 %v433, %v434
        %v436 = vsel %vm407, %v344, -inf
        %v437 = vrot.slane %v436, 4
        %v438 = vmax.f32 %v436, %v437
        %v439 = vrot.slane %v438, 2
        %v440 = vmax.f32 %v438, %v439
        %v441 = vrot.slane %v440, 1
        %v442 = vmax.f32 %v440, %v441
        %v443 = vsel %vm407, %v362, -inf
        %v444 = vrot.slane %v443, 4
        %v445 = vmax.f32 %v443, %v444
        %v446 = vrot.slane %v445, 2
        %v447 = vmax.f32 %v445, %v446
        %v448 = vrot.slane %v447, 1
        %v449 = vmax.f32 %v447, %v448
        %v450 = vsel %vm407, %v363, -inf
        %v451 = vrot.slane %v450, 4
        %v452 = vmax.f32 %v450, %v451
        %v453 = vrot.slane %v452, 2
        %v454 = vmax.f32 %v452, %v453
        %v455 = vrot.slane %v454, 1
        %v456 = vmax.f32 %v454, %v455
        %v457 = vsel %vm407, %v364, -inf
        %v458 = vrot.slane %v457, 4
        %v459 = vmax.f32 %v457, %v458
        %v460 = vrot.slane %v459, 2
        %v461 = vmax.f32 %v459, %v460
        %v462 = vrot.slane %v461, 1
        %v463 = vmax.f32 %v461, %v462
        %v464 = vsel %vm407, %v345, -inf
        %v465 = vrot.slane %v464, 4
        %v466 = vmax.f32 %v464, %v465
        %v467 = vrot.slane %v466, 2
        %v468 = vmax.f32 %v466, %v467
        %v469 = vrot.slane %v468, 1
        %v470 = vmax.f32 %v468, %v469
        %v471 = vsel %vm407, %v365, -inf
        %v472 = vrot.slane %v471, 4
        %v473 = vmax.f32 %v471, %v472
        %v474 = vrot.slane %v473, 2
        %v475 = vmax.f32 %v473, %v474
        %v476 = vrot.slane %v475, 1
        %v477 = vmax.f32 %v475, %v476
        %v478 = vsel %vm407, %v366, -inf
        %v479 = vrot.slane %v478, 4
        %v480 = vmax.f32 %v478, %v479
        %v481 = vrot.slane %v480, 2
        %v482 = vmax.f32 %v480, %v481
        %v483 = vrot.slane %v482, 1
        %v484 = vmax.f32 %v482, %v483
        %v485 = vsel %vm407, %v367, -inf
        %v486 = vrot.slane %v485, 4
        %v487 = vmax.f32 %v485, %v486
        %v488 = vrot.slane %v487, 2
        %v489 = vmax.f32 %v487, %v488
        %v490 = vrot.slane %v489, 1
        %v491 = vmax.f32 %v489, %v490
        %v492 = vsel %vm407, %v346, -inf
        %v493 = vrot.slane %v492, 4
        %v494 = vmax.f32 %v492, %v493
        %v495 = vrot.slane %v494, 2
        %v496 = vmax.f32 %v494, %v495
        %v497 = vrot.slane %v496, 1
        %v498 = vmax.f32 %v496, %v497
        %v499 = vsel %vm407, %v368, -inf
        %v500 = vrot.slane %v499, 4
        %v501 = vmax.f32 %v499, %v500
        %v502 = vrot.slane %v501, 2
        %v503 = vmax.f32 %v501, %v502
        %v504 = vrot.slane %v503, 1
        %v505 = vmax.f32 %v503, %v504
        %v506 = vsel %vm407, %v369, -inf
        %v507 = vrot.slane %v506, 4
        %v508 = vmax.f32 %v506, %v507
        %v509 = vrot.slane %v508, 2
        %v510 = vmax.f32 %v508, %v509
        %v511 = vrot.slane %v510, 1
        %v512 = vmax.f32 %v510, %v511
        %v513 = vsel %vm407, %v370, -inf
        %v514 = vrot.slane %v513, 4
        %v515 = vmax.f32 %v513, %v514
        %v516 = vrot.slane %v515, 2
        %v517 = vmax.f32 %v515, %v516
        %v518 = vrot.slane %v517, 1
        %v519 = vmax.f32 %v517, %v518
        %v520 = vsel %vm407, %v347, -inf
        %v521 = vrot.slane %v520, 4
        %v522 = vmax.f32 %v520, %v521
        %v523 = vrot.slane %v522, 2
        %v524 = vmax.f32 %v522, %v523
        %v525 = vrot.slane %v524, 1
        %v526 = vmax.f32 %v524, %v525
        %v527 = vsel %vm407, %v371, -inf
        %v528 = vrot.slane %v527, 4
        %v529 = vmax.f32 %v527, %v528
        %v530 = vrot.slane %v529, 2
        %v531 = vmax.f32 %v529, %v530
        %v532 = vrot.slane %v531, 1
        %v533 = vmax.f32 %v531, %v532
        %v534 = vsel %vm407, %v372, -inf
        %v535 = vrot.slane %v534, 4
        %v536 = vmax.f32 %v534, %v535
        %v537 = vrot.slane %v536, 2
        %v538 = vmax.f32 %v536, %v537
        %v539 = vrot.slane %v538, 1
        %v540 = vmax.f32 %v538, %v539
        %v541 = vsel %vm407, %v373, -inf
        %v542 = vrot.slane %v541, 4
        %v543 = vmax.f32 %v541, %v542
        %v544 = vrot.slane %v543, 2
        %v545 = vmax.f32 %v543, %v544
        %v546 = vrot.slane %v545, 1
        %v547 = vmax.f32 %v545, %v546
        %v548 = vsel %vm407, %v348, -inf
        %v549 = vrot.slane %v548, 4
        %v550 = vmax.f32 %v548, %v549
        %v551 = vrot.slane %v550, 2
        %v552 = vmax.f32 %v550, %v551
        %v553 = vrot.slane %v552, 1
        %v554 = vmax.f32 %v552, %v553
        %v555 = vsel %vm407, %v374, -inf
        %v556 = vrot.slane %v555, 4
        %v557 = vmax.f32 %v555, %v556
        %v558 = vrot.slane %v557, 2
        %v559 = vmax.f32 %v557, %v558
        %v560 = vrot.slane %v559, 1
        %v561 = vmax.f32 %v559, %v560
        %v562 = vsel %vm407, %v375, -inf
        %v563 = vrot.slane %v562, 4
        %v564 = vmax.f32 %v562, %v563
        %v565 = vrot.slane %v564, 2
        %v566 = vmax.f32 %v564, %v565
        %v567 = vrot.slane %v566, 1
        %v568 = vmax.f32 %v566, %v567
        %v569 = vsel %vm407, %v376, -inf
        %v570 = vrot.slane %v569, 4
        %v571 = vmax.f32 %v569, %v570
        %v572 = vrot.slane %v571, 2
        %v573 = vmax.f32 %v571, %v572
        %v574 = vrot.slane %v573, 1
        %v575 = vmax.f32 %v573, %v574
        %v576 = vsel %vm407, %v349, -inf
        %v577 = vrot.slane %v576, 4
        %v578 = vmax.f32 %v576, %v577
        %v579 = vrot.slane %v578, 2
        %v580 = vmax.f32 %v578, %v579
        %v581 = vrot.slane %v580, 1
        %v582 = vmax.f32 %v580, %v581
        %v583 = vsel %vm407, %v377, -inf
        %v584 = vrot.slane %v583, 4
        %v585 = vmax.f32 %v583, %v584
        %v586 = vrot.slane %v585, 2
        %v587 = vmax.f32 %v585, %v586
        %v588 = vrot.slane %v587, 1
        %v589 = vmax.f32 %v587, %v588
        %v590 = vsel %vm407, %v378, -inf
        %v591 = vrot.slane %v590, 4
        %v592 = vmax.f32 %v590, %v591
        %v593 = vrot.slane %v592, 2
        %v594 = vmax.f32 %v592, %v593
        %v595 = vrot.slane %v594, 1
        %v596 = vmax.f32 %v594, %v595
        %v597 = vsel %vm407, %v379, -inf
        %v598 = vrot.slane %v597, 4
        %v599 = vmax.f32 %v597, %v598
        %v600 = vrot.slane %v599, 2
        %v601 = vmax.f32 %v599, %v600
        %v602 = vrot.slane %v601, 1
        %v603 = vmax.f32 %v601, %v602
        %v604 = vsel %vm407, %v350, -inf
        %v605 = vrot.slane %v604, 4
        %v606 = vmax.f32 %v604, %v605
        %v607 = vrot.slane %v606, 2
        %v608 = vmax.f32 %v606, %v607
        %v609 = vrot.slane %v608, 1
        %v610 = vmax.f32 %v608, %v609
        %v611 = vsel %vm407, %v380, -inf
        %v612 = vrot.slane %v611, 4
        %v613 = vmax.f32 %v611, %v612
        %v614 = vrot.slane %v613, 2
        %v615 = vmax.f32 %v613, %v614
        %v616 = vrot.slane %v615, 1
        %v617 = vmax.f32 %v615, %v616
        %v618 = vsel %vm407, %v381, -inf
        %v619 = vrot.slane %v618, 4
        %v620 = vmax.f32 %v618, %v619
        %v621 = vrot.slane %v620, 2
        %v622 = vmax.f32 %v620, %v621
        %v623 = vrot.slane %v622, 1
        %v624 = vmax.f32 %v622, %v623
        %v625 = vsel %vm407, %v382, -inf
        %v626 = vrot.slane %v625, 4
        %v627 = vmax.f32 %v625, %v626
        %v628 = vrot.slane %v627, 2
        %v629 = vmax.f32 %v627, %v628
        %v630 = vrot.slane %v629, 1
        %v631 = vmax.f32 %v629, %v630
        %v632 = vpack.c.bf16 %v414, %v414
        %v633 = vpack.c.bf16 %v421, %v421
        %v634 = vpack.c.bf16 %v428, %v428
        %v635 = vpack.c.bf16 %v435, %v435
        %v636 = vpack.c.bf16 %v442, %v442
        %v637 = vpack.c.bf16 %v449, %v449
        %v638 = vpack.c.bf16 %v456, %v456
        %v639 = vpack.c.bf16 %v463, %v463
        %v640 = vpack.c.bf16 %v470, %v470
        %v641 = vpack.c.bf16 %v477, %v477
        %v642 = vpack.c.bf16 %v484, %v484
        %v643 = vpack.c.bf16 %v491, %v491
        %v644 = vpack.c.bf16 %v498, %v498
        %v645 = vpack.c.bf16 %v505, %v505
        %v646 = vpack.c.bf16 %v512, %v512
        %v647 = vpack.c.bf16 %v519, %v519
        %v648 = vpack.c.bf16 %v526, %v526
        %v649 = vpack.c.bf16 %v533, %v533
        %v650 = vpack.c.bf16 %v540, %v540
        %v651 = vpack.c.bf16 %v547, %v547
        %v652 = vpack.c.bf16 %v554, %v554
        %v653 = vpack.c.bf16 %v561, %v561
        %v654 = vpack.c.bf16 %v568, %v568
        %v655 = vpack.c.bf16 %v575, %v575
        %v656 = vpack.c.bf16 %v582, %v582
        %v657 = vpack.c.bf16 %v589, %v589
        %v658 = vpack.c.bf16 %v596, %v596
        %v659 = vpack.c.bf16 %v603, %v603
        %v660 = vpack.c.bf16 %v610, %v610
        %v661 = vpack.c.bf16 %v617, %v617
        %v662 = vpack.c.bf16 %v624, %v624
        %v663 = vpack.c.bf16 %v631, %v631
        %v696 = vunpack.c.l.b16 %v632
        %v697 = vunpack.c.l.b16 %v633
        %v698 = vunpack.c.l.b16 %v634
        %v699 = vunpack.c.l.b16 %v635
        %v700 = vunpack.c.l.b16 %v636
        %v701 = vunpack.c.l.b16 %v637
        %v702 = vunpack.c.l.b16 %v638
        %v703 = vunpack.c.l.b16 %v639
        %v704 = vunpack.c.l.b16 %v640
        %v705 = vunpack.c.l.b16 %v641
        %v706 = vunpack.c.l.b16 %v642
        %v707 = vunpack.c.l.b16 %v643
        %v708 = vunpack.c.l.b16 %v644
        %v709 = vunpack.c.l.b16 %v645
        %v710 = vunpack.c.l.b16 %v646
        %v711 = vunpack.c.l.b16 %v647
        %v712 = vunpack.c.l.b16 %v648
        %v713 = vunpack.c.l.b16 %v649
        %v714 = vunpack.c.l.b16 %v650
        %v715 = vunpack.c.l.b16 %v651
        %v716 = vunpack.c.l.b16 %v652
        %v717 = vunpack.c.l.b16 %v653
        %v718 = vunpack.c.l.b16 %v654
        %v719 = vunpack.c.l.b16 %v655
        %v720 = vunpack.c.l.b16 %v656
        %v721 = vunpack.c.l.b16 %v657
        %v722 = vunpack.c.l.b16 %v658
        %v723 = vunpack.c.l.b16 %v659
        %v724 = vunpack.c.l.b16 %v660
        %v725 = vunpack.c.l.b16 %v661
        %v726 = vunpack.c.l.b16 %v662
        %v727 = vunpack.c.l.b16 %v663
        %vm728 = vcmask 1041409
        %v729 = vsel %vm728, %v697, %v696
        %vm730 = vcmask 1042434
        %v731 = vsel %vm730, %v698, %v729
        %vm732 = vcmask 1043459
        %v733 = vsel %vm732, %v699, %v731
        %vm734 = vcmask 1044484
        %v735 = vsel %vm734, %v700, %v733
        %vm736 = vcmask 1045509
        %v737 = vsel %vm736, %v701, %v735
        %vm738 = vcmask 1046534
        %v739 = vsel %vm738, %v702, %v737
        %vm740 = vcmask 1047559
        %v741 = vsel %vm740, %v703, %v739
        %v742 = vsel %vm728, %v705, %v704
        %v743 = vsel %vm730, %v706, %v742
        %v744 = vsel %vm732, %v707, %v743
        %v745 = vsel %vm734, %v708, %v744
        %v746 = vsel %vm736, %v709, %v745
        %v747 = vsel %vm738, %v710, %v746
        %v748 = vsel %vm740, %v711, %v747
        %v749 = vsel %vm728, %v713, %v712
        %v750 = vsel %vm730, %v714, %v749
        %v751 = vsel %vm732, %v715, %v750
        %v752 = vsel %vm734, %v716, %v751
        %v753 = vsel %vm736, %v717, %v752
        %v754 = vsel %vm738, %v718, %v753
        %v755 = vsel %vm740, %v719, %v754
        %v756 = vsel %vm728, %v721, %v720
        %v757 = vsel %vm730, %v722, %v756
        %v758 = vsel %vm732, %v723, %v757
        %v759 = vsel %vm734, %v724, %v758
        %v760 = vsel %vm736, %v725, %v759
        %v761 = vsel %vm738, %v726, %v760
        %v762 = vsel %vm740, %v727, %v761
        %v763 = vpack.c.b16 %v741, %v741
        %v764 = vpack.c.b16 %v748, %v748
        %v765 = vpack.c.b16 %v755, %v755
        %v766 = vpack.c.b16 %v762, %v762
        %vm771 = vcmask 257024
        %772 = vst.msk [vmem:[%s163] sm:$0xf] %vm771, %v763
        %773 = vst.msk [vmem:[%s163 + $0x4] sm:$0xf] %vm771, %v764
        %774 = vst.msk [vmem:[%s163 + $0x8] sm:$0xf] %vm771, %v765
        %775 = vst.msk [vmem:[%s163 + $0xc] sm:$0xf] %vm771, %v766
        %s776 = sand.u32 %s93, 1
        %s777 = scalar_lea.sflag [#allocation3], %s776
        %s778 = sand.u32 %s93, 1
        %s779 = smul.addr %s778, 16
        %s780 = scalar_lea.vmem [#allocation2], %s779
        // Predicated region
        $region33: #{tpu_custom_call.1} parent=31 // pred_check
          %p781 = pneg %p103
        $region34: #{tpu_custom_call.1} parent=31 // pred_check_branch
          %783 = sbr.rel (%p781) target = $region36
        $region35: #{tpu_custom_call.1} parent=31 // pred_region
          %785 = vsyncadd %s777, 0
          %s786 = smul.addr %s17, 4
          %s787 = smul.addr %s786, 4
          %s788 = scalar_lea.hbm %s3, %s787
          %s789 = sshll.u32 %s780, 4
          %s790 = int_to_ptr.vmem [resolvable:$true] %s789
          %s791 = sshll.u32 %s788, 4
          %s792 = int_to_ptr.hbm [resolvable:$true] %s791
          %797 = dma.vmem_to_hbm [thread:$0]  %s790, 256, %s792, %s777, 64, 64, 4
        $region36: #{tpu_custom_call.1} parent=31 // pred_fallthru
          _
      $region32: #{tpu_custom_call.1} parent=5 // pred_fallthru
        _
      %p798 = scmp.le.s32.totalorder 2, %s12
      // Predicated region
      $region37: #{tpu_custom_call.1} parent=5 // pred_check
        %p799 = pneg %p798
      $region38: #{tpu_custom_call.1} parent=5 // pred_check_branch
        %801 = sbr.rel (%p799) target = $region40
      $region39: #{tpu_custom_call.1} parent=5 // pred_region
        %s802 = ssub.s32 %s12, 2
        // Predicated region
        $region41: #{tpu_custom_call.1} parent=39 // pred_check
          %p803 = pneg %p109
        $region42: #{tpu_custom_call.1} parent=39 // pred_check_branch
          %805 = sbr.rel (%p803) target = $region44
        $region43: #{tpu_custom_call.1} parent=39 // pred_region
          %s806 = sand.u32 %s94, 1
          %s807 = scalar_lea.sflag [#allocation3], %s806
          %s808 = sand.u32 %s94, 1
          %s809 = smul.addr %s808, 16
          %s810 = scalar_lea.vmem [#allocation2], %s809
          %812 = dma.done %s807, 256
        $region44: #{tpu_custom_call.1} parent=39 // pred_fallthru
          _
      $region40: #{tpu_custom_call.1} parent=5 // pred_fallthru
        _
    $region6: #{tpu_custom_call.1} parent=1 // loop_footer
      %s16 = sadd.s32 1, %s12
    $region7: #{tpu_custom_call.1} parent=1 // loop_footer_branch
      %11 = sbr.rel target = $region3
    $region8: #{tpu_custom_call.1} parent=1 // loop_exit
      _
    %813 = vsyncpa [#allocation3], 1
    %s814 = scalar_lea.sflag [#allocation3], 1
    %815 = vsyncpa %s814, 1

</llo_original>
